<compile_context>
chip_gen: v7x
topology: tpu7x:2x2x1
jax: 0.10.0
libtpu: 0.0.40
codegen_flags: <defaults>
</compile_context>

<pallas_src>
import math

import jax
import jax.numpy as jnp
from jax.experimental import pallas as pl
from jax.experimental.pallas import tpu as pltpu

D_MODEL = 32
N_HEAD = 4
D_K = D_MODEL // N_HEAD
LN_EPS = 1e-5

# Per-grid-step working-set budget (double-buffered x tile + f32
# intermediates).  Leaves headroom inside v7x's 64 MiB VMEM; v5e/v6e have
# 128 MiB so this is conservative there.
_VMEM_WORKSET_BUDGET = 40 << 20


def pooling_kernel(x_ref, mavg_ref, wsv_ref, bsv_ref, wo_ref, bo_ref, out_ref):
    TB, Sg, L = x_ref.shape          # L = pack * D lanes (128 when S % 4 == 0)
    D = out_ref.shape[1]             # d_model (= segment width)

    x = x_ref[...].astype(jnp.float32).reshape(TB * Sg, L)

    # --- LayerNorm (per D-lane feature segment) ---------------------------
    # Per-segment mean / variance via a block-diagonal averaging matmul (the
    # MXU is nearly idle; keeps the VPU work lane-dense).  gamma/beta are
    # folded into wsv/bsv by the wrapper, so only mean/var/rsqrt remain here.
    mavg = mavg_ref[...]
    mean = jnp.dot(x, mavg, preferred_element_type=jnp.float32)
    xc = x - mean
    var = jnp.dot(xc * xc, mavg, preferred_element_type=jnp.float32)
    xn = xc * jax.lax.rsqrt(var + LN_EPS)

    # --- fused [head scores | V] matmul ------------------------------------
    # Column layout is [L score lanes | L V lanes]: the split below sits on a
    # 128-lane tile boundary, so both slices are free views.
    sv = jnp.dot(xn, wsv_ref[...], preferred_element_type=jnp.float32) + bsv_ref[...]
    sv = sv.reshape(TB, Sg, 2 * L)
    scores = sv[:, :, :L]            # (TB, Sg, L): score_{head(d)} at position
    v = sv[:, :, L:]                 # (TB, Sg, L): V projection

    # --- softmax over the whole sequence -----------------------------------
    # Sequence positions live on both the packed-group axis (axis=1) and the
    # `pack` lane segments; cross-segment max/sum use XLU rolls (free slot).
    shifts = []
    s = D
    while s < L:
        shifts.append(s)
        s *= 2

    m = jnp.max(scores, axis=1)                           # (TB, L)
    for sh in shifts:
        m = jnp.maximum(m, pltpu.roll(m, sh, axis=1))
    p = jnp.exp(scores - m[:, None, :])
    denom = jnp.sum(p, axis=1)                            # (TB, L)
    for sh in shifts:
        denom = denom + pltpu.roll(denom, sh, axis=1)
    w = p * (1.0 / denom)[:, None, :]                     # exact reciprocal

    # --- attention output + output projection ------------------------------
    # Per-lane weighted sum over packed groups; the remaining cross-segment
    # reduction is folded into W_O (stacked `pack` times) by the wrapper.
    attn = jnp.sum(w * v, axis=1)                         # (TB, L)
    out = jnp.dot(attn, wo_ref[...], preferred_element_type=jnp.float32) + bo_ref[...]
    # Output store is (TB, D=32): lane-sparse but tiny (x / (2*S) in volume).
    # Optionally 4 batch rows could be folded per 128-lane output row for
    # fully dense stores on v5e — secondary (~few %) win, skipped here.
    out_ref[...] = out.astype(out_ref.dtype)


def _fold_params(params, pack):
    """Fold all batch-invariant math into the kernel weights.

    * LayerNorm gamma/beta fold into W_K/W_V (row scale + bias shift).
    * The learned query projection (scaled by 1/sqrt(d_k)) and the per-head
      score reduction fold into W_K, so lane d of the score half directly
      yields score_{head(d)} (replicated over that head's d_k lanes).
    * Everything is lane-packed: `pack` sequence positions share one row, so
      the fused weight is block-diagonal (pack*D, 2*pack*D) with the score
      half on the first 128-lane tile and the V half on the second.
    * W_O is stacked `pack` times so the output matmul also performs the
      cross-segment reduction of the attention output.
    """
    D = params["wq"].shape[0]
    dk = D // N_HEAD

    gamma = params["ln_g"]                                     # (1, D)
    beta = params["ln_b"]                                      # (1, D)
    wk = params["wk"] * gamma[0][:, None]                      # diag(gamma) @ Wk
    bk = params["bk"] + beta @ params["wk"]
    wv = params["wv"] * gamma[0][:, None]
    bv = params["bv"] + beta @ params["wv"]

    # Q = query @ Wq + bq, pre-scaled by 1/sqrt(d_k); batch-invariant.
    q_scaled = (params["query"] @ params["wq"] + params["bq"]) / math.sqrt(dk)
    head = jnp.arange(D) // dk
    same_head = (head[:, None] == head[None, :]).astype(jnp.float32)    # (D, D)
    w_score = (wk * q_scaled) @ same_head                      # (D, D)
    b_score = (bk * q_scaled) @ same_head                      # (1, D)

    L = pack * D
    seg = jnp.arange(L) // D
    same_seg = (seg[:, None] == seg[None, :]).astype(jnp.float32)       # (L, L)
    w_sv = jnp.concatenate(
        [same_seg * jnp.tile(w_score, (pack, pack)),           # block-diag scores
         same_seg * jnp.tile(wv, (pack, pack))], axis=1)       # block-diag V
    b_sv = jnp.concatenate(
        [jnp.tile(b_score, (1, pack)), jnp.tile(bv, (1, pack))], axis=1)
    mavg = same_seg / D                                        # segment-mean matmul
    w_o = jnp.tile(params["wo"], (pack, 1))                    # (L, D)
    return mavg, w_sv, b_sv, w_o, params["bo"]


def _choose_batch_tile(B, cap):
    """Pick TB s.t. TB divides B (no padded HBM copy of x), TB is a multiple
    of 8 (dense sublane stores) or the whole batch, TB <= cap (VMEM), and —
    when reasonable — the grid has >= 2 steps (feeds both v7x TensorCores).
    Returns 0 if no such divisor exists (caller falls back to padding)."""
    if B <= cap:
        if B % 16 == 0 and B // 2 >= 256:
            return B // 2                 # >= 2 grid steps for v7x megacore
        return B
    t = (min(cap, B) // 8) * 8
    while t >= 8:
        if B % t == 0:
            return t
        t -= 8
    return 0


def pooling_layer(x, params, batch_tile=1024):
    """Pallas forward of PoolingLayer.  x: (B, S, D), f32 or bf16 (bf16 input
    halves the HBM traffic of the only large stream; compute stays f32)."""
    B, S, D = x.shape

    # Lane packing: fold `pack` sequence positions per 128-lane row.
    # TODO(synk): for S % 4 != 0 a masked tail would keep full lane density;
    # here we gracefully degrade to pack=2 / pack=1.
    pack = 1
    for cand in (4, 2, 1):
        if cand * D <= 128 and S % cand == 0:
            pack = cand
            break
    Sg, L = S // pack, pack * D
    xp = x.reshape(B, Sg, L)                     # contiguous reshape — free

    mavg, w_sv, b_sv, w_o, b_o = _fold_params(params, pack)

    in_bytes = xp.dtype.itemsize
    out_bytes = x.dtype.itemsize
    # Per-batch-row working set: double-buffered x tile + ~10 full-size f32
    # intermediates + the output row.
    per_row = Sg * L * (2 * in_bytes + 10 * 4) + 2 * D * out_bytes
    tb_vmem_cap = max(8, (_VMEM_WORKSET_BUDGET // per_row) // 8 * 8)
    cap = min(max(8, (batch_tile // 8) * 8), tb_vmem_cap)

    TB = _choose_batch_tile(B, cap)
    if TB == 0:
        # Last resort: pad the batch up to a tile multiple.  This costs one
        # extra HBM copy of x, so it only triggers when B has no suitable
        # multiple-of-8 divisor below the VMEM cap.
        TB = cap
        pad = (-B) % TB
        xp = jnp.pad(xp, ((0, pad), (0, 0), (0, 0)))
    Bp = xp.shape[0]
    grid = (Bp // TB,)

    # TODO(synk): for very large S add an S grid axis with online-softmax
    # accumulators instead of holding the whole (TB, Sg, L) slab in VMEM.

    tile_elems = TB * Sg * L
    vmem_limit = int(min(max(
        2 * tile_elems * in_bytes            # double-buffered x tile
        + 10 * tile_elems * 4                # f32 intermediates
        + (3 * L * L + 2 * L + L * D + D) * 4  # resident folded weights
        + 2 * TB * D * out_bytes             # double-buffered output tile
        + (4 << 20),                         # headroom
        32 << 20), 56 << 20))                # never exceed v7x-safe cap

    full2d = lambda b: (0, 0)
    out = pl.pallas_call(
        pooling_kernel,
        out_shape=jax.ShapeDtypeStruct((Bp, D), x.dtype),
        grid_spec=pltpu.PrefetchScalarGridSpec(
            num_scalar_prefetch=0,
            grid=grid,
            in_specs=[
                pl.BlockSpec((TB, Sg, L), lambda b: (b, 0, 0)),   # x tile
                pl.BlockSpec((L, L), full2d),          # block-diag averaging
                pl.BlockSpec((L, 2 * L), full2d),      # fused [W_score | W_V]
                pl.BlockSpec((1, 2 * L), full2d),      # fused [b_score | b_V]
                pl.BlockSpec((L, D), full2d),          # stacked W_O
                pl.BlockSpec((1, D), full2d),          # b_O
            ],
            out_specs=pl.BlockSpec((TB, D), lambda b: (b, 0)),
        ),
        compiler_params=pltpu.CompilerParams(
            dimension_semantics=("parallel",),
            vmem_limit_bytes=vmem_limit),
    )(xp, mavg, w_sv, b_sv, w_o, b_o)
    return out[:B]


def reference(x, p):
    """Pure-JAX reference matching the PyTorch forward (dropout = identity)."""
    B, S, D = x.shape
    mean = jnp.mean(x, axis=-1, keepdims=True)
    var = jnp.mean((x - mean) ** 2, axis=-1, keepdims=True)
    xn = (x - mean) / jnp.sqrt(var + LN_EPS) * p["ln_g"][0] + p["ln_b"][0]
    q = jnp.broadcast_to(p["query"], (B, 1, D))
    Q = q @ p["wq"] + p["bq"][0]
    K = xn @ p["wk"] + p["bk"][0]
    V = xn @ p["wv"] + p["bv"][0]
    Q = Q.reshape(B, 1, N_HEAD, D_K).transpose(0, 2, 1, 3)
    K = K.reshape(B, S, N_HEAD, D_K).transpose(0, 2, 1, 3)
    V = V.reshape(B, S, N_HEAD, D_K).transpose(0, 2, 1, 3)
    scores = (Q / math.sqrt(D_K)) @ K.transpose(0, 1, 3, 2)
    w = jax.nn.softmax(scores, axis=-1)
    attn = (w @ V).transpose(0, 2, 1, 3).reshape(B, 1, D)
    out = attn @ p["wo"] + p["bo"][0]
    return out[:, 0, :]


def init_params(key, d_model):
    ks = jax.random.split(key, 5)
    bound = math.sqrt(6.0 / (d_model + d_model))  # xavier_uniform
    def xav(k):
        return jax.random.uniform(k, (d_model, d_model), jnp.float32, -bound, bound)
    return {
        "query": jax.random.normal(ks[0], (1, d_model), jnp.float32),
        "ln_g": jnp.ones((1, d_model), jnp.float32),
        "ln_b": jnp.zeros((1, d_model), jnp.float32),
        # stored already transposed to (in, out); biases as (1, D)
        "wq": xav(ks[1]), "bq": jnp.zeros((1, d_model), jnp.float32),
        "wk": xav(ks[2]), "bk": jnp.zeros((1, d_model), jnp.float32),
        "wv": xav(ks[3]), "bv": jnp.zeros((1, d_model), jnp.float32),
        "wo": xav(ks[4]), "bo": jnp.zeros((1, d_model), jnp.float32),
    }


if __name__ == "__main__":
    key = jax.random.PRNGKey(0)
    kx, kp = jax.random.split(key)
    B, S, D = 2, 8, D_MODEL
    x = jax.random.normal(kx, (B, S, D), jnp.float32)
    params = init_params(kp, D)

    # f32 path: strict check against the pure-JAX reference.
    out = jax.block_until_ready(pooling_layer(x, params))
    ref = reference(x, params)
    assert out.shape == (B, D)
    assert jnp.allclose(out, ref, atol=2e-3, rtol=2e-3), (
        f"f32 max abs err {jnp.max(jnp.abs(out - ref))}")

    # bf16-streamed path: halves HBM bytes of the only large input; reference
    # is evaluated on the same bf16-quantised input, tolerance covers the
    # bf16 output rounding.
    x_bf16 = x.astype(jnp.bfloat16)
    out_bf = jax.block_until_ready(pooling_layer(x_bf16, params))
    ref_bf = reference(x_bf16.astype(jnp.float32), params)
    assert jnp.allclose(out_bf.astype(jnp.float32), ref_bf, atol=2e-2, rtol=2e-2), (
        f"bf16 max abs err {jnp.max(jnp.abs(out_bf.astype(jnp.float32) - ref_bf))}")

    print("KERNEL_OK")
</pallas_src>

<mosaic_0001>
module attributes {stable_mosaic.version = 11 : i64} {
  func.func @pooling_kernel(%arg0: i32, %arg1: memref<2x2x128xf32, #tpu.memory_space<vmem>>, %arg2: memref<128x128xf32, #tpu.memory_space<vmem>>, %arg3: memref<128x256xf32, #tpu.memory_space<vmem>>, %arg4: memref<1x256xf32, #tpu.memory_space<vmem>>, %arg5: memref<128x32xf32, #tpu.memory_space<vmem>>, %arg6: memref<1x32xf32, #tpu.memory_space<vmem>>, %arg7: memref<2x32xf32, #tpu.memory_space<vmem>>) attributes {dimension_semantics = [#tpu.dimension_semantics<parallel>], iteration_bounds = array<i64: 1>, scalar_prefetch = 0 : i64, scratch_operands = 0 : i64, tpu.core_type = #tpu.core_type<tc>, window_params = [{transform_indices = @transform_0, window_bounds = array<i64: 2, 2, 128>}, {pipeline_mode = #tpu.pipeline_mode<synchronous>, transform_indices = @transform_1, window_bounds = array<i64: 128, 128>}, {pipeline_mode = #tpu.pipeline_mode<synchronous>, transform_indices = @transform_2, window_bounds = array<i64: 128, 256>}, {pipeline_mode = #tpu.pipeline_mode<synchronous>, transform_indices = @transform_3, window_bounds = array<i64: 1, 256>}, {pipeline_mode = #tpu.pipeline_mode<synchronous>, transform_indices = @transform_4, window_bounds = array<i64: 128, 32>}, {pipeline_mode = #tpu.pipeline_mode<synchronous>, transform_indices = @transform_5, window_bounds = array<i64: 1, 32>}, {transform_indices = @transform_6, window_bounds = array<i64: 2, 32>}]} {
    %c0 = arith.constant 0 : index
    %c0_0 = arith.constant 0 : index
    %c0_1 = arith.constant 0 : index
    %0 = vector.load %arg1[%c0, %c0_0, %c0_1] : memref<2x2x128xf32, #tpu.memory_space<vmem>>, vector<2x2x128xf32>
    %1 = vector.shape_cast %0 : vector<2x2x128xf32> to vector<4x128xf32>
    %c0_2 = arith.constant 0 : index
    %c0_3 = arith.constant 0 : index
    %2 = vector.load %arg2[%c0_2, %c0_3] : memref<128x128xf32, #tpu.memory_space<vmem>>, vector<128x128xf32>
    %cst = arith.constant dense<0.000000e+00> : vector<4x128xf32>
    %3 = tpu.matmul %1, %2, %cst {dimension_numbers = #tpu.dot_dimension_numbers<[1], [0], [0], [1], [0, 0, 1, 1], [], []>} : vector<4x128xf32>, vector<128x128xf32>, vector<4x128xf32> -> vector<4x128xf32>
    %4 = arith.subf %1, %3 : vector<4x128xf32>
    %5 = arith.mulf %4, %4 : vector<4x128xf32>
    %cst_4 = arith.constant dense<0.000000e+00> : vector<4x128xf32>
    %6 = tpu.matmul %5, %2, %cst_4 {dimension_numbers = #tpu.dot_dimension_numbers<[1], [0], [0], [1], [0, 0, 1, 1], [], []>} : vector<4x128xf32>, vector<128x128xf32>, vector<4x128xf32> -> vector<4x128xf32>
    %cst_5 = arith.constant 9.99999974E-6 : f32
    %7 = vector.broadcast %cst_5 : f32 to vector<4x128xf32>
    %8 = arith.addf %6, %7 : vector<4x128xf32>
    %9 = math.rsqrt %8 : vector<4x128xf32>
    %10 = arith.mulf %4, %9 : vector<4x128xf32>
    %c0_6 = arith.constant 0 : index
    %c0_7 = arith.constant 0 : index
    %11 = vector.load %arg3[%c0_6, %c0_7] : memref<128x256xf32, #tpu.memory_space<vmem>>, vector<128x256xf32>
    %cst_8 = arith.constant dense<0.000000e+00> : vector<4x256xf32>
    %12 = tpu.matmul %10, %11, %cst_8 {dimension_numbers = #tpu.dot_dimension_numbers<[1], [0], [0], [1], [0, 0, 1, 1], [], []>} : vector<4x128xf32>, vector<128x256xf32>, vector<4x256xf32> -> vector<4x256xf32>
    %c0_9 = arith.constant 0 : index
    %c0_10 = arith.constant 0 : index
    %13 = vector.load %arg4[%c0_9, %c0_10] : memref<1x256xf32, #tpu.memory_space<vmem>>, vector<1x256xf32>
    %14 = vector.broadcast %13 : vector<1x256xf32> to vector<4x256xf32>
    %15 = arith.addf %12, %14 : vector<4x256xf32>
    %16 = vector.shape_cast %15 : vector<4x256xf32> to vector<2x2x256xf32>
    %17 = vector.extract_strided_slice %16 {offsets = [0, 0, 0], sizes = [2, 2, 128], strides = [1, 1, 1]} : vector<2x2x256xf32> to vector<2x2x128xf32>
    %18 = vector.extract_strided_slice %16 {offsets = [0, 0, 128], sizes = [2, 2, 128], strides = [1, 1, 1]} : vector<2x2x256xf32> to vector<2x2x128xf32>
    %cst_11 = arith.constant dense<0xFF800000> : vector<2x128xf32>
    %19 = vector.multi_reduction <maximumf>, %17, %cst_11 [1] : vector<2x2x128xf32> to vector<2x128xf32>
    %c32_i32 = arith.constant 32 : i32
    %20 = tpu.dynamic_rotate %19 by %c32_i32 dim 1 : vector<2x128xf32>, i32 -> vector<2x128xf32>
    %21 = arith.maximumf %19, %20 : vector<2x128xf32>
    %c64_i32 = arith.constant 64 : i32
    %22 = tpu.dynamic_rotate %21 by %c64_i32 dim 1 : vector<2x128xf32>, i32 -> vector<2x128xf32>
    %23 = arith.maximumf %21, %22 : vector<2x128xf32>
    %24 = vector.shape_cast %23 : vector<2x128xf32> to vector<2x1x128xf32>
    %25 = vector.broadcast %24 : vector<2x1x128xf32> to vector<2x2x128xf32>
    %26 = arith.subf %17, %25 : vector<2x2x128xf32>
    %27 = math.exp %26 : vector<2x2x128xf32>
    %cst_12 = arith.constant dense<0.000000e+00> : vector<2x128xf32>
    %28 = vector.multi_reduction <add>, %27, %cst_12 [1] : vector<2x2x128xf32> to vector<2x128xf32>
    %c32_i32_13 = arith.constant 32 : i32
    %29 = tpu.dynamic_rotate %28 by %c32_i32_13 dim 1 : vector<2x128xf32>, i32 -> vector<2x128xf32>
    %30 = arith.addf %28, %29 : vector<2x128xf32>
    %c64_i32_14 = arith.constant 64 : i32
    %31 = tpu.dynamic_rotate %30 by %c64_i32_14 dim 1 : vector<2x128xf32>, i32 -> vector<2x128xf32>
    %32 = arith.addf %30, %31 : vector<2x128xf32>
    %cst_15 = arith.constant 1.000000e+00 : f32
    %33 = vector.broadcast %cst_15 : f32 to vector<2x128xf32>
    %34 = arith.divf %33, %32 : vector<2x128xf32>
    %35 = vector.shape_cast %34 : vector<2x128xf32> to vector<2x1x128xf32>
    %36 = vector.broadcast %35 : vector<2x1x128xf32> to vector<2x2x128xf32>
    %37 = arith.mulf %27, %36 : vector<2x2x128xf32>
    %38 = arith.mulf %37, %18 : vector<2x2x128xf32>
    %cst_16 = arith.constant dense<0.000000e+00> : vector<2x128xf32>
    %39 = vector.multi_reduction <add>, %38, %cst_16 [1] : vector<2x2x128xf32> to vector<2x128xf32>
    %c0_17 = arith.constant 0 : index
    %c0_18 = arith.constant 0 : index
    %40 = vector.load %arg5[%c0_17, %c0_18] : memref<128x32xf32, #tpu.memory_space<vmem>>, vector<128x32xf32>
    %cst_19 = arith.constant dense<0.000000e+00> : vector<2x32xf32>
    %41 = tpu.matmul %39, %40, %cst_19 {dimension_numbers = #tpu.dot_dimension_numbers<[1], [0], [0], [1], [0, 0, 1, 1], [], []>} : vector<2x128xf32>, vector<128x32xf32>, vector<2x32xf32> -> vector<2x32xf32>
    %c0_20 = arith.constant 0 : index
    %c0_21 = arith.constant 0 : index
    %42 = vector.load %arg6[%c0_20, %c0_21] : memref<1x32xf32, #tpu.memory_space<vmem>>, vector<1x32xf32>
    %43 = vector.broadcast %42 : vector<1x32xf32> to vector<2x32xf32>
    %44 = arith.addf %41, %43 : vector<2x32xf32>
    %c0_22 = arith.constant 0 : index
    %c0_23 = arith.constant 0 : index
    %45 = vector.load %arg7[%c0_22, %c0_23] : memref<2x32xf32, #tpu.memory_space<vmem>>, vector<2x32xf32>
    tpu.vector_store %arg7[%c0_22, %c0_23], %44 {strides = array<i32>} : memref<2x32xf32, #tpu.memory_space<vmem>>, vector<2x32xf32>,
    return
  }
  func.func @transform_0(%arg0: i32) -> (i32, i32, i32) {
    %c0_i32 = arith.constant 0 : i32
    %c0_i32_0 = arith.constant 0 : i32
    %c0_i32_1 = arith.constant 0 : i32
    return %arg0, %c0_i32, %c0_i32_0 : i32, i32, i32
  }
  func.func @transform_1(%arg0: i32) -> (i32, i32) {
    %c0_i32 = arith.constant 0 : i32
    %c0_i32_0 = arith.constant 0 : i32
    %c0_i32_1 = arith.constant 0 : i32
    return %c0_i32, %c0_i32_0 : i32, i32
  }
  func.func @transform_2(%arg0: i32) -> (i32, i32) {
    %c0_i32 = arith.constant 0 : i32
    %c0_i32_0 = arith.constant 0 : i32
    %c0_i32_1 = arith.constant 0 : i32
    return %c0_i32, %c0_i32_0 : i32, i32
  }
  func.func @transform_3(%arg0: i32) -> (i32, i32) {
    %c0_i32 = arith.constant 0 : i32
    %c0_i32_0 = arith.constant 0 : i32
    %c0_i32_1 = arith.constant 0 : i32
    return %c0_i32, %c0_i32_0 : i32, i32
  }
  func.func @transform_4(%arg0: i32) -> (i32, i32) {
    %c0_i32 = arith.constant 0 : i32
    %c0_i32_0 = arith.constant 0 : i32
    %c0_i32_1 = arith.constant 0 : i32
    return %c0_i32, %c0_i32_0 : i32, i32
  }
  func.func @transform_5(%arg0: i32) -> (i32, i32) {
    %c0_i32 = arith.constant 0 : i32
    %c0_i32_0 = arith.constant 0 : i32
    %c0_i32_1 = arith.constant 0 : i32
    return %c0_i32, %c0_i32_0 : i32, i32
  }
  func.func @transform_6(%arg0: i32) -> (i32, i32) {
    %c0_i32 = arith.constant 0 : i32
    %c0_i32_0 = arith.constant 0 : i32
    return %arg0, %c0_i32 : i32, i32
  }
}

</mosaic_0001>

<llo_original>
// kernel: tpu_custom_call.1
$region0: #{tpu_custom_call.1}
  #allocation0 [shape = 'u32[]', space=smem, size = 0x4, offset = 0x4, fixed_abs, tag = 'smem constant byte address 0x4 - core index']
  #allocation1 [shape = 'u32[144,128]{1,0:T(1,128)}', space=vmem, size = 0x12000, scoped, tag = 'internal scratch']
  %s0 = inlined_call_operand.vmem [shape: f32[2,2,128], index: 0, kind: input, shape index: {}]
  %s1 = inlined_call_operand.vmem [shape: f32[128,128], index: 1, kind: input, shape index: {}]
  %s2 = inlined_call_operand.hbm [shape: f32[128,256], index: 2, kind: input, shape index: {}]
  %s3 = inlined_call_operand.vmem [shape: f32[1,256], index: 3, kind: input, shape index: {}]
  %s4 = inlined_call_operand.vmem [shape: f32[128,32], index: 4, kind: input, shape index: {}]
  %s5 = inlined_call_operand.vmem [shape: f32[1,32], index: 5, kind: input, shape index: {}]
  %s6 = inlined_call_operand.hbm [shape: f32[2,32], index: 6, kind: output, shape index: {}]
  %s7 = sld [smem:[#allocation0]]
  $region38: #{tpu_custom_call.1} parent=0
    _
  %s9 = ssub.s32 1, %s7
  %s10 = scalar_select 0, %s9, %s7
  $region1: #{tpu_custom_call.1} parent=0
    #allocation2 [shape = 'u8[131072]{0}', space=vmem, size = 0x20000, scoped, tag = 'input window, operand 2, single buffered']
    #allocation3 [shape = 's32[1]{0}', space=sflag, size = 0x4, scoped, tag = 'scoped memory for tpu_custom_call.1']
    #allocation4 [shape = 's32[1]{0}', space=sflag, size = 0x4, scoped, tag = 'scoped memory for tpu_custom_call.1']
    #allocation5 [shape = 'u8[1024]{0}', space=vmem, size = 0x400, scoped, tag = 'output window, operand 0, single buffered']
    %11 = vsyncpa [#allocation3], 0
    %12 = vsyncpa [#allocation4], 0
    // Predicated region
    $region2: #{tpu_custom_call.1} parent=1 // pred_check
      _
    $region3: #{tpu_custom_call.1} parent=1 // pred_check_branch
      %14 = sbr.rel (0) target = $region5
    $region4: #{tpu_custom_call.1} parent=1 // pred_region
      _
    $region5: #{tpu_custom_call.1} parent=1 // pred_fallthru
      _
    // Predicated region
    $region6: #{tpu_custom_call.1} parent=1 // pred_check
      _
    $region7: #{tpu_custom_call.1} parent=1 // pred_check_branch
      %16 = sbr.rel (0) target = $region9
    $region8: #{tpu_custom_call.1} parent=1 // pred_region
      _
    $region9: #{tpu_custom_call.1} parent=1 // pred_fallthru
      _
    // Predicated region
    $region10: #{tpu_custom_call.1} parent=1 // pred_check
      _
    $region11: #{tpu_custom_call.1} parent=1 // pred_check_branch
      %18 = sbr.rel (0) target = $region13
    $region12: #{tpu_custom_call.1} parent=1 // pred_region
      %s20 = ssub.s32 4096, 4096
      %21 = vsyncadd [#allocation3], %s20
      %s22 = sshll.u32 [#allocation2], 4
      %s23 = int_to_ptr.vmem [resolvable:$true] %s22
      %28 = dma.hbm_to_vmem [thread:$0]  %s2, 4096, %s23, [#allocation3], 256, 256, 16
    $region13: #{tpu_custom_call.1} parent=1 // pred_fallthru
      _
    // Predicated region
    $region14: #{tpu_custom_call.1} parent=1 // pred_check
      _
    $region15: #{tpu_custom_call.1} parent=1 // pred_check_branch
      %30 = sbr.rel (0) target = $region17
    $region16: #{tpu_custom_call.1} parent=1 // pred_region
      _
    $region17: #{tpu_custom_call.1} parent=1 // pred_fallthru
      _
    // Predicated region
    $region18: #{tpu_custom_call.1} parent=1 // pred_check
      _
    $region19: #{tpu_custom_call.1} parent=1 // pred_check_branch
      %32 = sbr.rel (0) target = $region21
    $region20: #{tpu_custom_call.1} parent=1 // pred_region
      _
    $region21: #{tpu_custom_call.1} parent=1 // pred_fallthru
      _
    // Predicated region
    $region22: #{tpu_custom_call.1} parent=1 // pred_check
      _
    $region23: #{tpu_custom_call.1} parent=1 // pred_check_branch
      %34 = sbr.rel (0) target = $region25
    $region24: #{tpu_custom_call.1} parent=1 // pred_region
      _
    $region25: #{tpu_custom_call.1} parent=1 // pred_fallthru
      _
    // Predicated region
    $region26: #{tpu_custom_call.1} parent=1 // pred_check
      _
    $region27: #{tpu_custom_call.1} parent=1 // pred_check_branch
      %36 = sbr.rel (0) target = $region29
    $region28: #{tpu_custom_call.1} parent=1 // pred_region
      %37 = dma.done [#allocation3], 4096
    $region29: #{tpu_custom_call.1} parent=1 // pred_fallthru
      _
    %v38 = vld [vmem:[%s0] sm:$0x3]
    %v39 = vld [vmem:[%s0 + $0x2] sm:$0x3]
    %v40 = vld [vmem:[%s1] sm:$0xff]
    %v41 = vld [vmem:[%s1 + $0x8] sm:$0xff]
    %v42 = vld [vmem:[%s1 + $0x10] sm:$0xff]
    %v43 = vld [vmem:[%s1 + $0x18] sm:$0xff]
    %v44 = vld [vmem:[%s1 + $0x20] sm:$0xff]
    %v45 = vld [vmem:[%s1 + $0x28] sm:$0xff]
    %v46 = vld [vmem:[%s1 + $0x30] sm:$0xff]
    %v47 = vld [vmem:[%s1 + $0x38] sm:$0xff]
    %v48 = vld [vmem:[%s1 + $0x40] sm:$0xff]
    %v49 = vld [vmem:[%s1 + $0x48] sm:$0xff]
    %v50 = vld [vmem:[%s1 + $0x50] sm:$0xff]
    %v51 = vld [vmem:[%s1 + $0x58] sm:$0xff]
    %v52 = vld [vmem:[%s1 + $0x60] sm:$0xff]
    %v53 = vld [vmem:[%s1 + $0x68] sm:$0xff]
    %v54 = vld [vmem:[%s1 + $0x70] sm:$0xff]
    %v55 = vld [vmem:[%s1 + $0x78] sm:$0xff]
    %v58 = vcombine.low %v38, %v39
    %v60 = vunpack.c.l.s4 1983009808
    %v61 = vunpack.c.0.s8 %v60
    %v62 = vlaneseq
    %v63 = vshrl.u32 %v62, 7
    %v64 = vsub.s32 %v61, %v63
    %v65 = vrot.slane %v58, %v64
    %67 = vmatprep.subr.mxu0 0.0
    %68 = vmatpush1.msra.mxu0 %v40
    %69 = vmatprep.subr.mxu0 0.0
    %70 = vmatpush1.msra.mxu0 %v41
    %71 = vmatprep.subr.mxu0 0.0
    %72 = vmatpush1.msra.mxu0 %v42
    %73 = vmatprep.subr.mxu0 0.0
    %74 = vmatpush1.msra.mxu0 %v43
    %75 = vmatprep.subr.mxu0 0.0
    %76 = vmatpush1.msra.mxu0 %v44
    %77 = vmatprep.subr.mxu0 0.0
    %78 = vmatpush1.msra.mxu0 %v45
    %79 = vmatprep.subr.mxu0 0.0
    %80 = vmatpush1.msra.mxu0 %v46
    %81 = vmatprep.subr.mxu0 0.0
    %82 = vmatpush1.msra.mxu0 %v47
    %83 = vmatprep.subr.mxu0 0.0
    %84 = vmatpush1.msra.mxu0 %v48
    %85 = vmatprep.subr.mxu0 0.0
    %86 = vmatpush1.msra.mxu0 %v49
    %87 = vmatprep.subr.mxu0 0.0
    %88 = vmatpush1.msra.mxu0 %v50
    %89 = vmatprep.subr.mxu0 0.0
    %90 = vmatpush1.msra.mxu0 %v51
    %91 = vmatprep.subr.mxu0 0.0
    %92 = vmatpush1.msra.mxu0 %v52
    %93 = vmatprep.subr.mxu0 0.0
    %94 = vmatpush1.msra.mxu0 %v53
    %95 = vmatprep.subr.mxu0 0.0
    %96 = vmatpush1.msra.mxu0 %v54
    %97 = vmatprep.subr.mxu0 0.0
    %98 = vmatpush1.msra.mxu0 %v55
    %99 = vmatprep.subr.mxu0 0.0
    %100 = vmatpush1.msra.mxu0 0.0
    %101 = vmatprep.subr.mxu0 0.0
    %102 = vmatpush1.msra.mxu0 0.0
    %103 = vmatprep.subr.mxu0 0.0
    %104 = vmatpush1.msra.mxu0 0.0
    %105 = vmatprep.subr.mxu0 0.0
    %106 = vmatpush1.msra.mxu0 0.0
    %107 = vmatprep.subr.mxu0 0.0
    %108 = vmatpush1.msra.mxu0 0.0
    %109 = vmatprep.subr.mxu0 0.0
    %110 = vmatpush1.msra.mxu0 0.0
    %111 = vmatprep.subr.mxu0 0.0
    %112 = vmatpush1.msra.mxu0 0.0
    %113 = vmatprep.subr.mxu0 0.0
    %114 = vmatpush1.msra.mxu0 0.0
    %115 = vmatprep.subr.mxu0 0.0
    %116 = vmatpush1.msra.mxu0 0.0
    %117 = vmatprep.subr.mxu0 0.0
    %118 = vmatpush1.msra.mxu0 0.0
    %119 = vmatprep.subr.mxu0 0.0
    %120 = vmatpush1.msra.mxu0 0.0
    %121 = vmatprep.subr.mxu0 0.0
    %122 = vmatpush1.msra.mxu0 0.0
    %123 = vmatprep.subr.mxu0 0.0
    %124 = vmatpush1.msra.mxu0 0.0
    %125 = vmatprep.subr.mxu0 0.0
    %126 = vmatpush1.msra.mxu0 0.0
    %127 = vmatprep.subr.mxu0 0.0
    %128 = vmatpush1.msra.mxu0 0.0
    %129 = vmatprep.subr.mxu0 0.0
    %130 = vmatpush1.msra.mxu0 0.0
    %131 = vmatprep.mubr.f32.mxu0 0.0
    %132 = vmatmul.mubr.f32.gmra.mrb[0].mxu0 %v65
    %v133 = vpop.f32.mrb[0].mxu0
    %v134 = vadd.f32 0.0, %v133
    %v135 = vpop.f32.mrb[0].mxu0
    %136 = vdwg.mxu0
    %v139 = vunpack.c.l.s4 1983009808
    %v140 = vunpack.c.0.s8 %v139
    %v141 = vlaneseq
    %v142 = vshrl.u32 %v141, 7
    %v143 = vsub.s32 %v140, %v142
    %v144 = vrot.slane %v134, %v143
    %v145 = vcombine.high %v144, %v144
    %v148 = vsub.f32 %v38, %v144
    %v149 = vsub.f32 %v39, %v145
    %v150 = vmul.f32 %v148, %v148
    %v151 = vmul.f32 %v149, %v149
    %v154 = vcombine.low %v150, %v151
    %v156 = vunpack.c.l.s4 1983009808
    %v157 = vunpack.c.0.s8 %v156
    %v158 = vlaneseq
    %v159 = vshrl.u32 %v158, 7
    %v160 = vsub.s32 %v157, %v159
    %v161 = vrot.slane %v154, %v160
    %163 = vmatprep.subr.mxu0 0.0
    %164 = vmatpush1.msra.mxu0 %v40
    %165 = vmatprep.subr.mxu0 0.0
    %166 = vmatpush1.msra.mxu0 %v41
    %167 = vmatprep.subr.mxu0 0.0
    %168 = vmatpush1.msra.mxu0 %v42
    %169 = vmatprep.subr.mxu0 0.0
    %170 = vmatpush1.msra.mxu0 %v43
    %171 = vmatprep.subr.mxu0 0.0
    %172 = vmatpush1.msra.mxu0 %v44
    %173 = vmatprep.subr.mxu0 0.0
    %174 = vmatpush1.msra.mxu0 %v45
    %175 = vmatprep.subr.mxu0 0.0
    %176 = vmatpush1.msra.mxu0 %v46
    %177 = vmatprep.subr.mxu0 0.0
    %178 = vmatpush1.msra.mxu0 %v47
    %179 = vmatprep.subr.mxu0 0.0
    %180 = vmatpush1.msra.mxu0 %v48
    %181 = vmatprep.subr.mxu0 0.0
    %182 = vmatpush1.msra.mxu0 %v49
    %183 = vmatprep.subr.mxu0 0.0
    %184 = vmatpush1.msra.mxu0 %v50
    %185 = vmatprep.subr.mxu0 0.0
    %186 = vmatpush1.msra.mxu0 %v51
    %187 = vmatprep.subr.mxu0 0.0
    %188 = vmatpush1.msra.mxu0 %v52
    %189 = vmatprep.subr.mxu0 0.0
    %190 = vmatpush1.msra.mxu0 %v53
    %191 = vmatprep.subr.mxu0 0.0
    %192 = vmatpush1.msra.mxu0 %v54
    %193 = vmatprep.subr.mxu0 0.0
    %194 = vmatpush1.msra.mxu0 %v55
    %195 = vmatprep.subr.mxu0 0.0
    %196 = vmatpush1.msra.mxu0 0.0
    %197 = vmatprep.subr.mxu0 0.0
    %198 = vmatpush1.msra.mxu0 0.0
    %199 = vmatprep.subr.mxu0 0.0
    %200 = vmatpush1.msra.mxu0 0.0
    %201 = vmatprep.subr.mxu0 0.0
    %202 = vmatpush1.msra.mxu0 0.0
    %203 = vmatprep.subr.mxu0 0.0
    %204 = vmatpush1.msra.mxu0 0.0
    %205 = vmatprep.subr.mxu0 0.0
    %206 = vmatpush1.msra.mxu0 0.0
    %207 = vmatprep.subr.mxu0 0.0
    %208 = vmatpush1.msra.mxu0 0.0
    %209 = vmatprep.subr.mxu0 0.0
    %210 = vmatpush1.msra.mxu0 0.0
    %211 = vmatprep.subr.mxu0 0.0
    %212 = vmatpush1.msra.mxu0 0.0
    %213 = vmatprep.subr.mxu0 0.0
    %214 = vmatpush1.msra.mxu0 0.0
    %215 = vmatprep.subr.mxu0 0.0
    %216 = vmatpush1.msra.mxu0 0.0
    %217 = vmatprep.subr.mxu0 0.0
    %218 = vmatpush1.msra.mxu0 0.0
    %219 = vmatprep.subr.mxu0 0.0
    %220 = vmatpush1.msra.mxu0 0.0
    %221 = vmatprep.subr.mxu0 0.0
    %222 = vmatpush1.msra.mxu0 0.0
    %223 = vmatprep.subr.mxu0 0.0
    %224 = vmatpush1.msra.mxu0 0.0
    %225 = vmatprep.subr.mxu0 0.0
    %226 = vmatpush1.msra.mxu0 0.0
    %227 = vmatprep.mubr.f32.mxu0 0.0
    %228 = vmatmul.mubr.f32.gmra.mrb[0].mxu0 %v161
    %v229 = vpop.f32.mrb[0].mxu0
    %v230 = vadd.f32 1e-05, %v229
    %v231 = vpop.f32.mrb[0].mxu0
    %232 = vdwg.mxu0
    %v233 = vrsqrt.pop %v230
    %v236 = vunpack.c.l.s4 1983009808
    %v237 = vunpack.c.0.s8 %v236
    %v238 = vlaneseq
    %v239 = vshrl.u32 %v238, 7
    %v240 = vsub.s32 %v237, %v239
    %v241 = vrot.slane %v233, %v240
    %v242 = vcombine.high %v241, %v241
    %v245 = vmul.f32 %v148, %v241
    %v246 = vmul.f32 %v149, %v242
    %v247 = vld [vmem:[#allocation2] sm:$0xff]
    %v248 = vld [vmem:[#allocation2 + $0x8] sm:$0xff]
    %v249 = vld [vmem:[#allocation2 + $0x10] sm:$0xff]
    %v250 = vld [vmem:[#allocation2 + $0x18] sm:$0xff]
    %v251 = vld [vmem:[#allocation2 + $0x20] sm:$0xff]
    %v252 = vld [vmem:[#allocation2 + $0x28] sm:$0xff]
    %v253 = vld [vmem:[#allocation2 + $0x30] sm:$0xff]
    %v254 = vld [vmem:[#allocation2 + $0x38] sm:$0xff]
    %v255 = vld [vmem:[#allocation2 + $0x40] sm:$0xff]
    %v256 = vld [vmem:[#allocation2 + $0x48] sm:$0xff]
    %v257 = vld [vmem:[#allocation2 + $0x50] sm:$0xff]
    %v258 = vld [vmem:[#allocation2 + $0x58] sm:$0xff]
    %v259 = vld [vmem:[#allocation2 + $0x60] sm:$0xff]
    %v260 = vld [vmem:[#allocation2 + $0x68] sm:$0xff]
    %v261 = vld [vmem:[#allocation2 + $0x70] sm:$0xff]
    %v262 = vld [vmem:[#allocation2 + $0x78] sm:$0xff]
    %v263 = vld [vmem:[#allocation2 + $0x80] sm:$0xff]
    %v264 = vld [vmem:[#allocation2 + $0x88] sm:$0xff]
    %v265 = vld [vmem:[#allocation2 + $0x90] sm:$0xff]
    %v266 = vld [vmem:[#allocation2 + $0x98] sm:$0xff]
    %v267 = vld [vmem:[#allocation2 + $0xa0] sm:$0xff]
    %v268 = vld [vmem:[#allocation2 + $0xa8] sm:$0xff]
    %v269 = vld [vmem:[#allocation2 + $0xb0] sm:$0xff]
    %v270 = vld [vmem:[#allocation2 + $0xb8] sm:$0xff]
    %v271 = vld [vmem:[#allocation2 + $0xc0] sm:$0xff]
    %v272 = vld [vmem:[#allocation2 + $0xc8] sm:$0xff]
    %v273 = vld [vmem:[#allocation2 + $0xd0] sm:$0xff]
    %v274 = vld [vmem:[#allocation2 + $0xd8] sm:$0xff]
    %v275 = vld [vmem:[#allocation2 + $0xe0] sm:$0xff]
    %v276 = vld [vmem:[#allocation2 + $0xe8] sm:$0xff]
    %v277 = vld [vmem:[#allocation2 + $0xf0] sm:$0xff]
    %v278 = vld [vmem:[#allocation2 + $0xf8] sm:$0xff]
    %v279 = vld [vmem:[%s3] sm:$0x3]
    %v281 = vlaneseq
    %v282 = vshrl.u32 %v281, 7
    %v283 = vsub.s32 0, %v282
    %v284 = vrot.slane %v279, %v283
    %v285 = vlaneseq
    %v286 = vshrl.u32 %v285, 7
    %v287 = vsub.s32 1, %v286
    %v288 = vrot.slane %v279, %v287
    %v293 = vcombine.low %v245, %v246
    %v295 = vunpack.c.l.s4 1983009808
    %v296 = vunpack.c.0.s8 %v295
    %v297 = vlaneseq
    %v298 = vshrl.u32 %v297, 7
    %v299 = vsub.s32 %v296, %v298
    %v300 = vrot.slane %v293, %v299
    %302 = vmatprep.subr.mxu0 %v248
    %303 = vmatpush1.msra.mxu0 %v247
    %304 = vmatprep.subr.mxu0 %v250
    %305 = vmatpush1.msra.mxu0 %v249
    %306 = vmatprep.subr.mxu0 %v252
    %307 = vmatpush1.msra.mxu0 %v251
    %308 = vmatprep.subr.mxu0 %v254
    %309 = vmatpush1.msra.mxu0 %v253
    %310 = vmatprep.subr.mxu0 %v256
    %311 = vmatpush1.msra.mxu0 %v255
    %312 = vmatprep.subr.mxu0 %v258
    %313 = vmatpush1.msra.mxu0 %v257
    %314 = vmatprep.subr.mxu0 %v260
    %315 = vmatpush1.msra.mxu0 %v259
    %316 = vmatprep.subr.mxu0 %v262
    %317 = vmatpush1.msra.mxu0 %v261
    %318 = vmatprep.subr.mxu0 %v264
    %319 = vmatpush1.msra.mxu0 %v263
    %320 = vmatprep.subr.mxu0 %v266
    %321 = vmatpush1.msra.mxu0 %v265
    %322 = vmatprep.subr.mxu0 %v268
    %323 = vmatpush1.msra.mxu0 %v267
    %324 = vmatprep.subr.mxu0 %v270
    %325 = vmatpush1.msra.mxu0 %v269
    %326 = vmatprep.subr.mxu0 %v272
    %327 = vmatpush1.msra.mxu0 %v271
    %328 = vmatprep.subr.mxu0 %v274
    %329 = vmatpush1.msra.mxu0 %v273
    %330 = vmatprep.subr.mxu0 %v276
    %331 = vmatpush1.msra.mxu0 %v275
    %332 = vmatprep.subr.mxu0 %v278
    %333 = vmatpush1.msra.mxu0 %v277
    %334 = vmatprep.subr.mxu0 0.0
    %335 = vmatpush1.msra.mxu0 0.0
    %336 = vmatprep.subr.mxu0 0.0
    %337 = vmatpush1.msra.mxu0 0.0
    %338 = vmatprep.subr.mxu0 0.0
    %339 = vmatpush1.msra.mxu0 0.0
    %340 = vmatprep.subr.mxu0 0.0
    %341 = vmatpush1.msra.mxu0 0.0
    %342 = vmatprep.subr.mxu0 0.0
    %343 = vmatpush1.msra.mxu0 0.0
    %344 = vmatprep.subr.mxu0 0.0
    %345 = vmatpush1.msra.mxu0 0.0
    %346 = vmatprep.subr.mxu0 0.0
    %347 = vmatpush1.msra.mxu0 0.0
    %348 = vmatprep.subr.mxu0 0.0
    %349 = vmatpush1.msra.mxu0 0.0
    %350 = vmatprep.subr.mxu0 0.0
    %351 = vmatpush1.msra.mxu0 0.0
    %352 = vmatprep.subr.mxu0 0.0
    %353 = vmatpush1.msra.mxu0 0.0
    %354 = vmatprep.subr.mxu0 0.0
    %355 = vmatpush1.msra.mxu0 0.0
    %356 = vmatprep.subr.mxu0 0.0
    %357 = vmatpush1.msra.mxu0 0.0
    %358 = vmatprep.subr.mxu0 0.0
    %359 = vmatpush1.msra.mxu0 0.0
    %360 = vmatprep.subr.mxu0 0.0
    %361 = vmatpush1.msra.mxu0 0.0
    %362 = vmatprep.subr.mxu0 0.0
    %363 = vmatpush1.msra.mxu0 0.0
    %364 = vmatprep.subr.mxu0 0.0
    %365 = vmatpush1.msra.mxu0 0.0
    %366 = vmatprep.mubr.f32.mxu0 0.0
    %367 = vmatmul.mubr.f32.gmra.mrb[0].mxu0 %v300
    %v368 = vpop.f32.mrb[0].mxu0
    %v369 = vadd.f32 %v284, %v368
    %v370 = vpop.f32.mrb[0].mxu0
    %v371 = vadd.f32 %v288, %v370
    %372 = vdwg.mxu0
    %v375 = vcombine.low %v369, %v371
    %v377 = vunpack.c.l.s4 1983009808
    %v378 = vunpack.c.0.s8 %v377
    %v379 = vlaneseq
    %v380 = vshrl.u32 %v379, 7
    %v381 = vsub.s32 %v378, %v380
    %v382 = vrot.slane %v375, %v381
    %v383 = vcombine.high %v382, %v382
    %vm386 = vcmask 1041408
    %v387 = vsel %vm386, %v382, -inf
    %v388 = vrot.slane %v387, 4
    %v389 = vmax.f32 %v387, %v388
    %v390 = vrot.slane %v389, 2
    %v391 = vmax.f32 %v389, %v390
    %v392 = vrot.slane %v391, 1
    %v393 = vmax.f32 %v391, %v392
    %v394 = vsel %vm386, %v383, -inf
    %v395 = vrot.slane %v394, 4
    %v396 = vmax.f32 %v394, %v395
    %v397 = vrot.slane %v396, 2
    %v398 = vmax.f32 %v396, %v397
    %v399 = vrot.slane %v398, 1
    %v400 = vmax.f32 %v398, %v399
    %vm403 = vcmask 1041409
    %v404 = vsel %vm403, %v400, %v393
    %406 = vrot.lane.b32.xlu0 %v404, 32
    %v407 = vpop.permute.xlu0 %406
    %v409 = vrot.slane %v407, 1
    %v412 = vmax.f32 %v393, %v407
    %v413 = vmax.f32 %v400, %v409
    %v416 = vrot.slane %v413, 7
    %v417 = vsel %vm403, %v416, %v412
    %419 = vrot.lane.b32.xlu0 %v417, 64
    %v420 = vpop.permute.xlu0 %419
    %v422 = vrot.slane %v420, 1
    %v425 = vmax.f32 %v412, %v420
    %v426 = vmax.f32 %v413, %v422
    %v427 = vlaneseq
    %v428 = vshrl.u32 %v427, 7
    %v429 = vsub.s32 0, %v428
    %v430 = vrot.slane %v425, %v429
    %v431 = vlaneseq
    %v432 = vshrl.u32 %v431, 7
    %v433 = vsub.s32 0, %v432
    %v434 = vrot.slane %v426, %v433
    %v435 = vsub.f32 %v382, %v430
    %v436 = vsub.f32 %v383, %v434
    %v437 = vmul.f32 %v435, 1.442695
    %v438 = vpow.pop %v437
    %v439 = vmul.f32 %v436, 1.442695
    %v440 = vpow.pop %v439
    %v441 = vsel %vm386, %v438, 0.0
    %v442 = vrot.slane %v441, 4
    %v443 = vadd.f32 %v441, %v442
    %v444 = vrot.slane %v443, 2
    %v445 = vadd.f32 %v443, %v444
    %v446 = vrot.slane %v445, 1
    %v447 = vadd.f32 %v445, %v446
    %v448 = vsel %vm386, %v440, 0.0
    %v449 = vrot.slane %v448, 4
    %v450 = vadd.f32 %v448, %v449
    %v451 = vrot.slane %v450, 2
    %v452 = vadd.f32 %v450, %v451
    %v453 = vrot.slane %v452, 1
    %v454 = vadd.f32 %v452, %v453
    %v457 = vsel %vm403, %v454, %v447
    %459 = vrot.lane.b32.xlu0 %v457, 32
    %v460 = vpop.permute.xlu0 %459
    %v462 = vrot.slane %v460, 1
    %v465 = vadd.f32 %v447, %v460
    %v466 = vadd.f32 %v454, %v462
    %v469 = vrot.slane %v466, 7
    %v470 = vsel %vm403, %v469, %v465
    %472 = vrot.lane.b32.xlu0 %v470, 64
    %v473 = vpop.permute.xlu0 %472
    %v475 = vrot.slane %v473, 1
    %v478 = vadd.f32 %v465, %v473
    %v479 = vadd.f32 %v466, %v475
    %v480 = vrcp.pop %v478
    %v481 = vmul.f32 1.0, %v480
    %v482 = vrcp.pop %v479
    %v483 = vmul.f32 1.0, %v482
    %v484 = vlaneseq
    %v485 = vshrl.u32 %v484, 7
    %v486 = vsub.s32 0, %v485
    %v487 = vrot.slane %v481, %v486
    %v488 = vlaneseq
    %v489 = vshrl.u32 %v488, 7
    %v490 = vsub.s32 0, %v489
    %v491 = vrot.slane %v483, %v490
    %v492 = vmul.f32 %v438, %v487
    %v493 = vmul.f32 %v440, %v491
    %v494 = vrot.slane %v382, 2
    %v495 = vrot.slane %v383, 2
    %v498 = vmul.f32 %v492, %v494
    %v499 = vmul.f32 %v493, %v495
    %v500 = vsel %vm386, %v498, 0.0
    %v501 = vrot.slane %v500, 4
    %v502 = vadd.f32 %v500, %v501
    %v503 = vrot.slane %v502, 2
    %v504 = vadd.f32 %v502, %v503
    %v505 = vrot.slane %v504, 1
    %v506 = vadd.f32 %v504, %v505
    %v507 = vsel %vm386, %v499, 0.0
    %v508 = vrot.slane %v507, 4
    %v509 = vadd.f32 %v507, %v508
    %v510 = vrot.slane %v509, 2
    %v511 = vadd.f32 %v509, %v510
    %v512 = vrot.slane %v511, 1
    %v513 = vadd.f32 %v511, %v512
    %v514 = vld [vmem:[%s4] sm:$0xff]
    %v515 = vld [vmem:[%s4 + $0x8] sm:$0xff]
    %v516 = vld [vmem:[%s4 + $0x10] sm:$0xff]
    %v517 = vld [vmem:[%s4 + $0x18] sm:$0xff]
    %v518 = vld [vmem:[%s4 + $0x20] sm:$0xff]
    %v519 = vld [vmem:[%s4 + $0x28] sm:$0xff]
    %v520 = vld [vmem:[%s4 + $0x30] sm:$0xff]
    %v521 = vld [vmem:[%s4 + $0x38] sm:$0xff]
    %v522 = vld [vmem:[%s4 + $0x40] sm:$0xff]
    %v523 = vld [vmem:[%s4 + $0x48] sm:$0xff]
    %v524 = vld [vmem:[%s4 + $0x50] sm:$0xff]
    %v525 = vld [vmem:[%s4 + $0x58] sm:$0xff]
    %v526 = vld [vmem:[%s4 + $0x60] sm:$0xff]
    %v527 = vld [vmem:[%s4 + $0x68] sm:$0xff]
    %v528 = vld [vmem:[%s4 + $0x70] sm:$0xff]
    %v529 = vld [vmem:[%s4 + $0x78] sm:$0xff]
    %v530 = vld [vmem:[%s5] sm:$0x1]
    %v532 = vlaneseq
    %v533 = vshrl.u32 %v532, 7
    %v534 = vsub.s32 0, %v533
    %v535 = vrot.slane %v530, %v534
    %v539 = vsel %vm403, %v513, %v506
    %541 = vmatprep.subr.mxu0 0.0
    %542 = vmatpush1.msra.mxu0 %v514
    %543 = vmatprep.subr.mxu0 0.0
    %544 = vmatpush1.msra.mxu0 %v515
    %545 = vmatprep.subr.mxu0 0.0
    %546 = vmatpush1.msra.mxu0 %v516
    %547 = vmatprep.subr.mxu0 0.0
    %548 = vmatpush1.msra.mxu0 %v517
    %549 = vmatprep.subr.mxu0 0.0
    %550 = vmatpush1.msra.mxu0 %v518
    %551 = vmatprep.subr.mxu0 0.0
    %552 = vmatpush1.msra.mxu0 %v519
    %553 = vmatprep.subr.mxu0 0.0
    %554 = vmatpush1.msra.mxu0 %v520
    %555 = vmatprep.subr.mxu0 0.0
    %556 = vmatpush1.msra.mxu0 %v521
    %557 = vmatprep.subr.mxu0 0.0
    %558 = vmatpush1.msra.mxu0 %v522
    %559 = vmatprep.subr.mxu0 0.0
    %560 = vmatpush1.msra.mxu0 %v523
    %561 = vmatprep.subr.mxu0 0.0
    %562 = vmatpush1.msra.mxu0 %v524
    %563 = vmatprep.subr.mxu0 0.0
    %564 = vmatpush1.msra.mxu0 %v525
    %565 = vmatprep.subr.mxu0 0.0
    %566 = vmatpush1.msra.mxu0 %v526
    %567 = vmatprep.subr.mxu0 0.0
    %568 = vmatpush1.msra.mxu0 %v527
    %569 = vmatprep.subr.mxu0 0.0
    %570 = vmatpush1.msra.mxu0 %v528
    %571 = vmatprep.subr.mxu0 0.0
    %572 = vmatpush1.msra.mxu0 %v529
    %573 = vmatprep.subr.mxu0 0.0
    %574 = vmatpush1.msra.mxu0 0.0
    %575 = vmatprep.subr.mxu0 0.0
    %576 = vmatpush1.msra.mxu0 0.0
    %577 = vmatprep.subr.mxu0 0.0
    %578 = vmatpush1.msra.mxu0 0.0
    %579 = vmatprep.subr.mxu0 0.0
    %580 = vmatpush1.msra.mxu0 0.0
    %581 = vmatprep.subr.mxu0 0.0
    %582 = vmatpush1.msra.mxu0 0.0
    %583 = vmatprep.subr.mxu0 0.0
    %584 = vmatpush1.msra.mxu0 0.0
    %585 = vmatprep.subr.mxu0 0.0
    %586 = vmatpush1.msra.mxu0 0.0
    %587 = vmatprep.subr.mxu0 0.0
    %588 = vmatpush1.msra.mxu0 0.0
    %589 = vmatprep.subr.mxu0 0.0
    %590 = vmatpush1.msra.mxu0 0.0
    %591 = vmatprep.subr.mxu0 0.0
    %592 = vmatpush1.msra.mxu0 0.0
    %593 = vmatprep.subr.mxu0 0.0
    %594 = vmatpush1.msra.mxu0 0.0
    %595 = vmatprep.subr.mxu0 0.0
    %596 = vmatpush1.msra.mxu0 0.0
    %597 = vmatprep.subr.mxu0 0.0
    %598 = vmatpush1.msra.mxu0 0.0
    %599 = vmatprep.subr.mxu0 0.0
    %600 = vmatpush1.msra.mxu0 0.0
    %601 = vmatprep.subr.mxu0 0.0
    %602 = vmatpush1.msra.mxu0 0.0
    %603 = vmatprep.subr.mxu0 0.0
    %604 = vmatpush1.msra.mxu0 0.0
    %605 = vmatprep.mubr.f32.mxu0 0.0
    %606 = vmatmul.mubr.f32.gmra.mrb[0].mxu0 %v539
    %v607 = vpop.f32.mrb[0].mxu0
    %v608 = vadd.f32 %v535, %v607
    %v609 = vpop.f32.mrb[0].mxu0
    %610 = vdwg.mxu0
    %vm611 = vcmask 254976
    %612 = vst.msk [vmem:[#allocation5] sm:$0x3] %vm611, %v608
    // Predicated region
    $region30: #{tpu_custom_call.1} parent=1 // pred_check
      _
    $region31: #{tpu_custom_call.1} parent=1 // pred_check_branch
      %614 = sbr.rel (0) target = $region33
    $region32: #{tpu_custom_call.1} parent=1 // pred_region
      %s616 = ssub.s32 32, 32
      %617 = vsyncadd [#allocation4], %s616
      %s619 = sshll.u32 [#allocation5], 4
      %s620 = int_to_ptr.vmem [resolvable:$true] %s619
      %622 = dma.vmem_to_hbm [thread:$0]  %s620, 32, %s6, [#allocation4]
    $region33: #{tpu_custom_call.1} parent=1 // pred_fallthru
      _
    // Predicated region
    $region34: #{tpu_custom_call.1} parent=1 // pred_check
      _
    $region35: #{tpu_custom_call.1} parent=1 // pred_check_branch
      %624 = sbr.rel (0) target = $region37
    $region36: #{tpu_custom_call.1} parent=1 // pred_region
      %625 = dma.done [#allocation4], 32
    $region37: #{tpu_custom_call.1} parent=1 // pred_fallthru
      _
    %626 = vsyncpa [#allocation3], 1
    %627 = vsyncpa [#allocation4], 1

</llo_original>
